<compile_context>
chip_gen: v7x
topology: tpu7x:2x2x1
jax: 0.10.0
libtpu: 0.0.40
codegen_flags: <defaults>
</compile_context>

<pallas_src>
import jax
import jax.numpy as jnp
from jax.experimental import pallas as pl
from jax.experimental.pallas import tpu as pltpu

# ----------------------------- config ---------------------------------------
SEQ = 8
BATCH = 2
INPUT_DIM = 16
HIDDEN = 32          # h
FFNN_HIDDEN = 32     # FFNN(h, 32)
OUT_DIM = 5          # FFNN output classes
GATES = 4 * HIDDEN   # 128 (exactly one lane-width)

# Packed parameter-slab row offsets (all starts 8-sublane aligned).
R_WIH = 0                           # (INPUT_DIM, 4H)   rows  0..15   : W_ih.T
R_WHH = R_WIH + INPUT_DIM           # (HIDDEN, 4H)      rows 16..47   : W_hh.T
R_BL = R_WHH + HIDDEN               # (1, 4H)           row  48       : b_ih + b_hh
R_W1 = R_BL + 8                     # (HIDDEN, FFNN_H)  rows 56..87   : W1.T (lanes 0:32)
R_B1 = R_W1 + HIDDEN                # (1, FFNN_H)       row  88       : b1   (lanes 0:32)
R_W2 = R_B1 + 8                     # (FFNN_H, OUT)     rows 96..127  : W2.T (lanes 0:5)
R_B2 = R_W2 + FFNN_HIDDEN           # (1, OUT)          row  128      : b2   (lanes 0:5)
SLAB_ROWS = R_B2 + 8                # 136


# ----------------------------- fused kernel ---------------------------------
def fused_rnn_kernel(x_ref, p_ref, o_ref):
    """Fused LSTM (single sequence, batch -1) + FFNN head.

    x_ref: (SEQ, BATCH, INPUT_DIM)  full time-major input (batch sliced here)
    p_ref: (SLAB_ROWS, GATES)       one packed f32 parameter slab
    o_ref: (1, OUT_DIM)             log-softmax output
    """
    H = HIDDEN

    # --- batch-(-1) selection happens in-kernel (static slice, one time) -----
    x_last = x_ref[:, BATCH - 1, :]                          # (SEQ, INPUT_DIM)

    # --- unpack parameter slab (static, sublane-aligned slices, once) --------
    wih = p_ref[R_WIH:R_WIH + INPUT_DIM, :]                  # (16, 4H)
    whh = p_ref[R_WHH:R_WHH + H, :]                          # (32, 4H)
    b_l = p_ref[R_BL:R_BL + 1, :]                            # (1, 4H)

    # --- hoisted input projection: one matmul + bias, off the serial chain ---
    xproj = jnp.dot(x_last, wih, preferred_element_type=jnp.float32) + b_l  # (SEQ, 4H)

    # --- recurrence: fully unrolled, h/c live in vregs ------------------------
    h = jnp.zeros((1, H), jnp.float32)
    c = jnp.zeros((1, H), jnp.float32)
    for t in range(SEQ):  # SEQ is a compile-time constant -> static unroll
        gates = xproj[t:t + 1, :] + jnp.dot(h, whh, preferred_element_type=jnp.float32)
        sg = jax.nn.sigmoid(gates)   # full-vreg EUP op (i, f, o live here)
        th = jnp.tanh(gates)         # full-vreg EUP op (g lives here)
        i_g = sg[:, 0 * H:1 * H]
        f_g = sg[:, 1 * H:2 * H]
        g_g = th[:, 2 * H:3 * H]
        o_g = sg[:, 3 * H:4 * H]
        c = f_g * c + i_g * g_g
        h = o_g * jnp.tanh(c)

    # --- fused FFNN head: Linear -> ReLU -> Linear -> LogSoftmax -------------
    w1 = p_ref[R_W1:R_W1 + H, 0:FFNN_HIDDEN]                 # (32, 32)
    b1 = p_ref[R_B1:R_B1 + 1, 0:FFNN_HIDDEN]                 # (1, 32)
    w2 = p_ref[R_W2:R_W2 + FFNN_HIDDEN, 0:OUT_DIM]           # (32, 5)
    b2 = p_ref[R_B2:R_B2 + 1, 0:OUT_DIM]                     # (1, 5)

    z = jnp.maximum(jnp.dot(h, w1, preferred_element_type=jnp.float32) + b1, 0.0)
    logits = jnp.dot(z, w2, preferred_element_type=jnp.float32) + b2  # (1, OUT_DIM)

    # LogSoftmax (PyTorch dim=0 on a 1-D vector == the class axis here)
    m = jnp.max(logits, axis=-1, keepdims=True)
    s = logits - m
    lse = jnp.log(jnp.sum(jnp.exp(s), axis=-1, keepdims=True))
    o_ref[...] = s - lse


# ----------------------------- wrapper ---------------------------------------
def rnn_forward(x, params):
    """x: (SEQ, BATCH, INPUT_DIM) -> (OUT_DIM,) log-probabilities."""
    slab = params["slab"]
    flops = (
        2 * SEQ * INPUT_DIM * GATES                 # hoisted input projection
        + SEQ * (2 * HIDDEN * GATES + 10 * GATES)   # recurrent matmul + gate combine
        + 2 * HIDDEN * FFNN_HIDDEN                  # head layer 1
        + 2 * FFNN_HIDDEN * OUT_DIM                 # head layer 2
    )
    transcendentals = SEQ * (2 * GATES + HIDDEN) + OUT_DIM + 1
    bytes_accessed = (x.size + slab.size + OUT_DIM) * 4

    out = pl.pallas_call(
        fused_rnn_kernel,
        out_shape=jax.ShapeDtypeStruct((1, OUT_DIM), jnp.float32),
        in_specs=[pl.BlockSpec(memory_space=pltpu.MemorySpace.VMEM)] * 2,
        out_specs=pl.BlockSpec(memory_space=pltpu.MemorySpace.VMEM),
        cost_estimate=pl.CostEstimate(
            flops=flops,
            transcendentals=transcendentals,
            bytes_accessed=bytes_accessed,
        ),
    )(x, slab)
    return out[0]  # (OUT_DIM,)


# ----------------------------- params ----------------------------------------
def init_params(key):
    ks = jax.random.split(key, 8)
    bound_lstm = 1.0 / jnp.sqrt(HIDDEN)
    bound_w1 = 1.0 / jnp.sqrt(HIDDEN)
    bound_w2 = 1.0 / jnp.sqrt(FFNN_HIDDEN)
    u = lambda k, shape, b: jax.random.uniform(k, shape, jnp.float32, -b, b)

    wih = u(ks[0], (4 * HIDDEN, INPUT_DIM), bound_lstm)   # PyTorch layout (4H, in)
    whh = u(ks[1], (4 * HIDDEN, HIDDEN), bound_lstm)      # (4H, H)
    b_ih = u(ks[2], (4 * HIDDEN,), bound_lstm)
    b_hh = u(ks[3], (4 * HIDDEN,), bound_lstm)
    w1 = u(ks[4], (FFNN_HIDDEN, HIDDEN), bound_w1)
    b1 = u(ks[5], (FFNN_HIDDEN,), bound_w1)
    w2 = u(ks[6], (OUT_DIM, FFNN_HIDDEN), bound_w2)
    b2 = u(ks[7], (OUT_DIM,), bound_w2)

    # ONE pre-transposed, lane-padded, sublane-aligned parameter slab
    # -> a single prologue DMA (~68 KB) instead of three small ones.
    slab = jnp.zeros((SLAB_ROWS, GATES), jnp.float32)
    slab = slab.at[R_WIH:R_WIH + INPUT_DIM, :].set(wih.T)
    slab = slab.at[R_WHH:R_WHH + HIDDEN, :].set(whh.T)
    slab = slab.at[R_BL, :].set(b_ih + b_hh)
    slab = slab.at[R_W1:R_W1 + HIDDEN, 0:FFNN_HIDDEN].set(w1.T)
    slab = slab.at[R_B1, 0:FFNN_HIDDEN].set(b1)
    slab = slab.at[R_W2:R_W2 + FFNN_HIDDEN, 0:OUT_DIM].set(w2.T)
    slab = slab.at[R_B2, 0:OUT_DIM].set(b2)
    return {"slab": slab}


if __name__ == "__main__":
    key = jax.random.PRNGKey(0)
    k_x, k_p = jax.random.split(key)
    x = jax.random.normal(k_x, (SEQ, BATCH, INPUT_DIM), jnp.float32)
    params = init_params(k_p)

    out = jax.jit(rnn_forward)(x, params)
    out = jax.block_until_ready(out)
    assert out.shape == (OUT_DIM,)
    assert bool(jnp.all(jnp.isfinite(out)))
    # log-softmax sanity: probabilities should sum to ~1
    assert bool(jnp.abs(jnp.sum(jnp.exp(out)) - 1.0) < 1e-4)
    print("KERNEL_OK")
</pallas_src>

<mosaic_0001>
module attributes {stable_mosaic.version = 11 : i64} {
  func.func @fused_rnn_kernel(%arg0: memref<8x2x16xf32, #tpu.memory_space<vmem>>, %arg1: memref<136x128xf32, #tpu.memory_space<vmem>>, %arg2: memref<1x5xf32, #tpu.memory_space<vmem>>) attributes {dimension_semantics = [], scalar_prefetch = 0 : i64, scratch_operands = 0 : i64, tpu.core_type = #tpu.core_type<tc>} {
    %c0 = arith.constant 0 : index
    %c1 = arith.constant 1 : index
    %c0_0 = arith.constant 0 : index
    %0 = vector.load %arg0[%c0, %c1, %c0_0] : memref<8x2x16xf32, #tpu.memory_space<vmem>>, vector<8x1x16xf32>
    %1 = vector.shape_cast %0 : vector<8x1x16xf32> to vector<8x16xf32>
    %c0_1 = arith.constant 0 : index
    %c0_2 = arith.constant 0 : index
    %2 = vector.load %arg1[%c0_1, %c0_2] : memref<136x128xf32, #tpu.memory_space<vmem>>, vector<16x128xf32>
    %c16 = arith.constant 16 : index
    %c0_3 = arith.constant 0 : index
    %3 = vector.load %arg1[%c16, %c0_3] : memref<136x128xf32, #tpu.memory_space<vmem>>, vector<32x128xf32>
    %c48 = arith.constant 48 : index
    %c0_4 = arith.constant 0 : index
    %4 = vector.load %arg1[%c48, %c0_4] : memref<136x128xf32, #tpu.memory_space<vmem>>, vector<1x128xf32>
    %cst = arith.constant dense<0.000000e+00> : vector<8x128xf32>
    %5 = tpu.matmul %1, %2, %cst {dimension_numbers = #tpu.dot_dimension_numbers<[1], [0], [0], [1], [0, 0, 1, 1], [], []>} : vector<8x16xf32>, vector<16x128xf32>, vector<8x128xf32> -> vector<8x128xf32>
    %6 = vector.broadcast %4 : vector<1x128xf32> to vector<8x128xf32>
    %7 = arith.addf %5, %6 : vector<8x128xf32>
    %cst_5 = arith.constant 0.000000e+00 : f32
    %8 = vector.broadcast %cst_5 : f32 to vector<1x32xf32>
    %cst_6 = arith.constant 0.000000e+00 : f32
    %9 = vector.broadcast %cst_6 : f32 to vector<1x32xf32>
    %10 = vector.extract_strided_slice %7 {offsets = [0, 0], sizes = [1, 128], strides = [1, 1]} : vector<8x128xf32> to vector<1x128xf32>
    %cst_7 = arith.constant dense<0.000000e+00> : vector<1x128xf32>
    %11 = tpu.matmul %8, %3, %cst_7 {dimension_numbers = #tpu.dot_dimension_numbers<[1], [0], [0], [1], [0, 0, 1, 1], [], []>} : vector<1x32xf32>, vector<32x128xf32>, vector<1x128xf32> -> vector<1x128xf32>
    %12 = arith.addf %10, %11 : vector<1x128xf32>
    %13 = arith.negf %12 : vector<1x128xf32>
    %14 = math.exp %13 : vector<1x128xf32>
    %cst_8 = arith.constant 1.000000e+00 : f32
    %15 = vector.broadcast %cst_8 : f32 to vector<1x128xf32>
    %16 = arith.addf %15, %14 : vector<1x128xf32>
    %17 = arith.divf %15, %16 : vector<1x128xf32>
    %18 = math.tanh %12 : vector<1x128xf32>
    %19 = vector.extract_strided_slice %17 {offsets = [0, 0], sizes = [1, 32], strides = [1, 1]} : vector<1x128xf32> to vector<1x32xf32>
    %20 = vector.extract_strided_slice %17 {offsets = [0, 32], sizes = [1, 32], strides = [1, 1]} : vector<1x128xf32> to vector<1x32xf32>
    %21 = vector.extract_strided_slice %18 {offsets = [0, 64], sizes = [1, 32], strides = [1, 1]} : vector<1x128xf32> to vector<1x32xf32>
    %22 = vector.extract_strided_slice %17 {offsets = [0, 96], sizes = [1, 32], strides = [1, 1]} : vector<1x128xf32> to vector<1x32xf32>
    %23 = arith.mulf %20, %9 : vector<1x32xf32>
    %24 = arith.mulf %19, %21 : vector<1x32xf32>
    %25 = arith.addf %23, %24 : vector<1x32xf32>
    %26 = math.tanh %25 : vector<1x32xf32>
    %27 = arith.mulf %22, %26 : vector<1x32xf32>
    %28 = vector.extract_strided_slice %7 {offsets = [1, 0], sizes = [1, 128], strides = [1, 1]} : vector<8x128xf32> to vector<1x128xf32>
    %cst_9 = arith.constant dense<0.000000e+00> : vector<1x128xf32>
    %29 = tpu.matmul %27, %3, %cst_9 {dimension_numbers = #tpu.dot_dimension_numbers<[1], [0], [0], [1], [0, 0, 1, 1], [], []>} : vector<1x32xf32>, vector<32x128xf32>, vector<1x128xf32> -> vector<1x128xf32>
    %30 = arith.addf %28, %29 : vector<1x128xf32>
    %31 = arith.negf %30 : vector<1x128xf32>
    %32 = math.exp %31 : vector<1x128xf32>
    %cst_10 = arith.constant 1.000000e+00 : f32
    %33 = vector.broadcast %cst_10 : f32 to vector<1x128xf32>
    %34 = arith.addf %33, %32 : vector<1x128xf32>
    %35 = arith.divf %33, %34 : vector<1x128xf32>
    %36 = math.tanh %30 : vector<1x128xf32>
    %37 = vector.extract_strided_slice %35 {offsets = [0, 0], sizes = [1, 32], strides = [1, 1]} : vector<1x128xf32> to vector<1x32xf32>
    %38 = vector.extract_strided_slice %35 {offsets = [0, 32], sizes = [1, 32], strides = [1, 1]} : vector<1x128xf32> to vector<1x32xf32>
    %39 = vector.extract_strided_slice %36 {offsets = [0, 64], sizes = [1, 32], strides = [1, 1]} : vector<1x128xf32> to vector<1x32xf32>
    %40 = vector.extract_strided_slice %35 {offsets = [0, 96], sizes = [1, 32], strides = [1, 1]} : vector<1x128xf32> to vector<1x32xf32>
    %41 = arith.mulf %38, %25 : vector<1x32xf32>
    %42 = arith.mulf %37, %39 : vector<1x32xf32>
    %43 = arith.addf %41, %42 : vector<1x32xf32>
    %44 = math.tanh %43 : vector<1x32xf32>
    %45 = arith.mulf %40, %44 : vector<1x32xf32>
    %46 = vector.extract_strided_slice %7 {offsets = [2, 0], sizes = [1, 128], strides = [1, 1]} : vector<8x128xf32> to vector<1x128xf32>
    %cst_11 = arith.constant dense<0.000000e+00> : vector<1x128xf32>
    %47 = tpu.matmul %45, %3, %cst_11 {dimension_numbers = #tpu.dot_dimension_numbers<[1], [0], [0], [1], [0, 0, 1, 1], [], []>} : vector<1x32xf32>, vector<32x128xf32>, vector<1x128xf32> -> vector<1x128xf32>
    %48 = arith.addf %46, %47 : vector<1x128xf32>
    %49 = arith.negf %48 : vector<1x128xf32>
    %50 = math.exp %49 : vector<1x128xf32>
    %cst_12 = arith.constant 1.000000e+00 : f32
    %51 = vector.broadcast %cst_12 : f32 to vector<1x128xf32>
    %52 = arith.addf %51, %50 : vector<1x128xf32>
    %53 = arith.divf %51, %52 : vector<1x128xf32>
    %54 = math.tanh %48 : vector<1x128xf32>
    %55 = vector.extract_strided_slice %53 {offsets = [0, 0], sizes = [1, 32], strides = [1, 1]} : vector<1x128xf32> to vector<1x32xf32>
    %56 = vector.extract_strided_slice %53 {offsets = [0, 32], sizes = [1, 32], strides = [1, 1]} : vector<1x128xf32> to vector<1x32xf32>
    %57 = vector.extract_strided_slice %54 {offsets = [0, 64], sizes = [1, 32], strides = [1, 1]} : vector<1x128xf32> to vector<1x32xf32>
    %58 = vector.extract_strided_slice %53 {offsets = [0, 96], sizes = [1, 32], strides = [1, 1]} : vector<1x128xf32> to vector<1x32xf32>
    %59 = arith.mulf %56, %43 : vector<1x32xf32>
    %60 = arith.mulf %55, %57 : vector<1x32xf32>
    %61 = arith.addf %59, %60 : vector<1x32xf32>
    %62 = math.tanh %61 : vector<1x32xf32>
    %63 = arith.mulf %58, %62 : vector<1x32xf32>
    %64 = vector.extract_strided_slice %7 {offsets = [3, 0], sizes = [1, 128], strides = [1, 1]} : vector<8x128xf32> to vector<1x128xf32>
    %cst_13 = arith.constant dense<0.000000e+00> : vector<1x128xf32>
    %65 = tpu.matmul %63, %3, %cst_13 {dimension_numbers = #tpu.dot_dimension_numbers<[1], [0], [0], [1], [0, 0, 1, 1], [], []>} : vector<1x32xf32>, vector<32x128xf32>, vector<1x128xf32> -> vector<1x128xf32>
    %66 = arith.addf %64, %65 : vector<1x128xf32>
    %67 = arith.negf %66 : vector<1x128xf32>
    %68 = math.exp %67 : vector<1x128xf32>
    %cst_14 = arith.constant 1.000000e+00 : f32
    %69 = vector.broadcast %cst_14 : f32 to vector<1x128xf32>
    %70 = arith.addf %69, %68 : vector<1x128xf32>
    %71 = arith.divf %69, %70 : vector<1x128xf32>
    %72 = math.tanh %66 : vector<1x128xf32>
    %73 = vector.extract_strided_slice %71 {offsets = [0, 0], sizes = [1, 32], strides = [1, 1]} : vector<1x128xf32> to vector<1x32xf32>
    %74 = vector.extract_strided_slice %71 {offsets = [0, 32], sizes = [1, 32], strides = [1, 1]} : vector<1x128xf32> to vector<1x32xf32>
    %75 = vector.extract_strided_slice %72 {offsets = [0, 64], sizes = [1, 32], strides = [1, 1]} : vector<1x128xf32> to vector<1x32xf32>
    %76 = vector.extract_strided_slice %71 {offsets = [0, 96], sizes = [1, 32], strides = [1, 1]} : vector<1x128xf32> to vector<1x32xf32>
    %77 = arith.mulf %74, %61 : vector<1x32xf32>
    %78 = arith.mulf %73, %75 : vector<1x32xf32>
    %79 = arith.addf %77, %78 : vector<1x32xf32>
    %80 = math.tanh %79 : vector<1x32xf32>
    %81 = arith.mulf %76, %80 : vector<1x32xf32>
    %82 = vector.extract_strided_slice %7 {offsets = [4, 0], sizes = [1, 128], strides = [1, 1]} : vector<8x128xf32> to vector<1x128xf32>
    %cst_15 = arith.constant dense<0.000000e+00> : vector<1x128xf32>
    %83 = tpu.matmul %81, %3, %cst_15 {dimension_numbers = #tpu.dot_dimension_numbers<[1], [0], [0], [1], [0, 0, 1, 1], [], []>} : vector<1x32xf32>, vector<32x128xf32>, vector<1x128xf32> -> vector<1x128xf32>
    %84 = arith.addf %82, %83 : vector<1x128xf32>
    %85 = arith.negf %84 : vector<1x128xf32>
    %86 = math.exp %85 : vector<1x128xf32>
    %cst_16 = arith.constant 1.000000e+00 : f32
    %87 = vector.broadcast %cst_16 : f32 to vector<1x128xf32>
    %88 = arith.addf %87, %86 : vector<1x128xf32>
    %89 = arith.divf %87, %88 : vector<1x128xf32>
    %90 = math.tanh %84 : vector<1x128xf32>
    %91 = vector.extract_strided_slice %89 {offsets = [0, 0], sizes = [1, 32], strides = [1, 1]} : vector<1x128xf32> to vector<1x32xf32>
    %92 = vector.extract_strided_slice %89 {offsets = [0, 32], sizes = [1, 32], strides = [1, 1]} : vector<1x128xf32> to vector<1x32xf32>
    %93 = vector.extract_strided_slice %90 {offsets = [0, 64], sizes = [1, 32], strides = [1, 1]} : vector<1x128xf32> to vector<1x32xf32>
    %94 = vector.extract_strided_slice %89 {offsets = [0, 96], sizes = [1, 32], strides = [1, 1]} : vector<1x128xf32> to vector<1x32xf32>
    %95 = arith.mulf %92, %79 : vector<1x32xf32>
    %96 = arith.mulf %91, %93 : vector<1x32xf32>
    %97 = arith.addf %95, %96 : vector<1x32xf32>
    %98 = math.tanh %97 : vector<1x32xf32>
    %99 = arith.mulf %94, %98 : vector<1x32xf32>
    %100 = vector.extract_strided_slice %7 {offsets = [5, 0], sizes = [1, 128], strides = [1, 1]} : vector<8x128xf32> to vector<1x128xf32>
    %cst_17 = arith.constant dense<0.000000e+00> : vector<1x128xf32>
    %101 = tpu.matmul %99, %3, %cst_17 {dimension_numbers = #tpu.dot_dimension_numbers<[1], [0], [0], [1], [0, 0, 1, 1], [], []>} : vector<1x32xf32>, vector<32x128xf32>, vector<1x128xf32> -> vector<1x128xf32>
    %102 = arith.addf %100, %101 : vector<1x128xf32>
    %103 = arith.negf %102 : vector<1x128xf32>
    %104 = math.exp %103 : vector<1x128xf32>
    %cst_18 = arith.constant 1.000000e+00 : f32
    %105 = vector.broadcast %cst_18 : f32 to vector<1x128xf32>
    %106 = arith.addf %105, %104 : vector<1x128xf32>
    %107 = arith.divf %105, %106 : vector<1x128xf32>
    %108 = math.tanh %102 : vector<1x128xf32>
    %109 = vector.extract_strided_slice %107 {offsets = [0, 0], sizes = [1, 32], strides = [1, 1]} : vector<1x128xf32> to vector<1x32xf32>
    %110 = vector.extract_strided_slice %107 {offsets = [0, 32], sizes = [1, 32], strides = [1, 1]} : vector<1x128xf32> to vector<1x32xf32>
    %111 = vector.extract_strided_slice %108 {offsets = [0, 64], sizes = [1, 32], strides = [1, 1]} : vector<1x128xf32> to vector<1x32xf32>
    %112 = vector.extract_strided_slice %107 {offsets = [0, 96], sizes = [1, 32], strides = [1, 1]} : vector<1x128xf32> to vector<1x32xf32>
    %113 = arith.mulf %110, %97 : vector<1x32xf32>
    %114 = arith.mulf %109, %111 : vector<1x32xf32>
    %115 = arith.addf %113, %114 : vector<1x32xf32>
    %116 = math.tanh %115 : vector<1x32xf32>
    %117 = arith.mulf %112, %116 : vector<1x32xf32>
    %118 = vector.extract_strided_slice %7 {offsets = [6, 0], sizes = [1, 128], strides = [1, 1]} : vector<8x128xf32> to vector<1x128xf32>
    %cst_19 = arith.constant dense<0.000000e+00> : vector<1x128xf32>
    %119 = tpu.matmul %117, %3, %cst_19 {dimension_numbers = #tpu.dot_dimension_numbers<[1], [0], [0], [1], [0, 0, 1, 1], [], []>} : vector<1x32xf32>, vector<32x128xf32>, vector<1x128xf32> -> vector<1x128xf32>
    %120 = arith.addf %118, %119 : vector<1x128xf32>
    %121 = arith.negf %120 : vector<1x128xf32>
    %122 = math.exp %121 : vector<1x128xf32>
    %cst_20 = arith.constant 1.000000e+00 : f32
    %123 = vector.broadcast %cst_20 : f32 to vector<1x128xf32>
    %124 = arith.addf %123, %122 : vector<1x128xf32>
    %125 = arith.divf %123, %124 : vector<1x128xf32>
    %126 = math.tanh %120 : vector<1x128xf32>
    %127 = vector.extract_strided_slice %125 {offsets = [0, 0], sizes = [1, 32], strides = [1, 1]} : vector<1x128xf32> to vector<1x32xf32>
    %128 = vector.extract_strided_slice %125 {offsets = [0, 32], sizes = [1, 32], strides = [1, 1]} : vector<1x128xf32> to vector<1x32xf32>
    %129 = vector.extract_strided_slice %126 {offsets = [0, 64], sizes = [1, 32], strides = [1, 1]} : vector<1x128xf32> to vector<1x32xf32>
    %130 = vector.extract_strided_slice %125 {offsets = [0, 96], sizes = [1, 32], strides = [1, 1]} : vector<1x128xf32> to vector<1x32xf32>
    %131 = arith.mulf %128, %115 : vector<1x32xf32>
    %132 = arith.mulf %127, %129 : vector<1x32xf32>
    %133 = arith.addf %131, %132 : vector<1x32xf32>
    %134 = math.tanh %133 : vector<1x32xf32>
    %135 = arith.mulf %130, %134 : vector<1x32xf32>
    %136 = vector.extract_strided_slice %7 {offsets = [7, 0], sizes = [1, 128], strides = [1, 1]} : vector<8x128xf32> to vector<1x128xf32>
    %cst_21 = arith.constant dense<0.000000e+00> : vector<1x128xf32>
    %137 = tpu.matmul %135, %3, %cst_21 {dimension_numbers = #tpu.dot_dimension_numbers<[1], [0], [0], [1], [0, 0, 1, 1], [], []>} : vector<1x32xf32>, vector<32x128xf32>, vector<1x128xf32> -> vector<1x128xf32>
    %138 = arith.addf %136, %137 : vector<1x128xf32>
    %139 = arith.negf %138 : vector<1x128xf32>
    %140 = math.exp %139 : vector<1x128xf32>
    %cst_22 = arith.constant 1.000000e+00 : f32
    %141 = vector.broadcast %cst_22 : f32 to vector<1x128xf32>
    %142 = arith.addf %141, %140 : vector<1x128xf32>
    %143 = arith.divf %141, %142 : vector<1x128xf32>
    %144 = math.tanh %138 : vector<1x128xf32>
    %145 = vector.extract_strided_slice %143 {offsets = [0, 0], sizes = [1, 32], strides = [1, 1]} : vector<1x128xf32> to vector<1x32xf32>
    %146 = vector.extract_strided_slice %143 {offsets = [0, 32], sizes = [1, 32], strides = [1, 1]} : vector<1x128xf32> to vector<1x32xf32>
    %147 = vector.extract_strided_slice %144 {offsets = [0, 64], sizes = [1, 32], strides = [1, 1]} : vector<1x128xf32> to vector<1x32xf32>
    %148 = vector.extract_strided_slice %143 {offsets = [0, 96], sizes = [1, 32], strides = [1, 1]} : vector<1x128xf32> to vector<1x32xf32>
    %149 = arith.mulf %146, %133 : vector<1x32xf32>
    %150 = arith.mulf %145, %147 : vector<1x32xf32>
    %151 = arith.addf %149, %150 : vector<1x32xf32>
    %152 = math.tanh %151 : vector<1x32xf32>
    %153 = arith.mulf %148, %152 : vector<1x32xf32>
    %c56 = arith.constant 56 : index
    %c0_23 = arith.constant 0 : index
    %154 = vector.load %arg1[%c56, %c0_23] : memref<136x128xf32, #tpu.memory_space<vmem>>, vector<32x32xf32>
    %c88 = arith.constant 88 : index
    %c0_24 = arith.constant 0 : index
    %155 = vector.load %arg1[%c88, %c0_24] : memref<136x128xf32, #tpu.memory_space<vmem>>, vector<1x32xf32>
    %c96 = arith.constant 96 : index
    %c0_25 = arith.constant 0 : index
    %156 = vector.load %arg1[%c96, %c0_25] : memref<136x128xf32, #tpu.memory_space<vmem>>, vector<32x5xf32>
    %c128 = arith.constant 128 : index
    %c0_26 = arith.constant 0 : index
    %157 = vector.load %arg1[%c128, %c0_26] : memref<136x128xf32, #tpu.memory_space<vmem>>, vector<1x5xf32>
    %cst_27 = arith.constant dense<0.000000e+00> : vector<1x32xf32>
    %158 = tpu.matmul %153, %154, %cst_27 {dimension_numbers = #tpu.dot_dimension_numbers<[1], [0], [0], [1], [0, 0, 1, 1], [], []>} : vector<1x32xf32>, vector<32x32xf32>, vector<1x32xf32> -> vector<1x32xf32>
    %159 = arith.addf %158, %155 : vector<1x32xf32>
    %cst_28 = arith.constant 0.000000e+00 : f32
    %160 = vector.broadcast %cst_28 : f32 to vector<1x32xf32>
    %161 = arith.maximumf %159, %160 : vector<1x32xf32>
    %cst_29 = arith.constant dense<0.000000e+00> : vector<1x5xf32>
    %162 = tpu.matmul %161, %156, %cst_29 {dimension_numbers = #tpu.dot_dimension_numbers<[1], [0], [0], [1], [0, 0, 1, 1], [], []>} : vector<1x32xf32>, vector<32x5xf32>, vector<1x5xf32> -> vector<1x5xf32>
    %163 = arith.addf %162, %157 : vector<1x5xf32>
    %cst_30 = arith.constant dense<0xFF800000> : vector<1xf32>
    %164 = vector.multi_reduction <maximumf>, %163, %cst_30 [1] : vector<1x5xf32> to vector<1xf32>
    %165 = vector.shape_cast %164 : vector<1xf32> to vector<1x1xf32>
    %166 = vector.broadcast %165 : vector<1x1xf32> to vector<1x5xf32>
    %167 = arith.subf %163, %166 : vector<1x5xf32>
    %168 = math.exp %167 : vector<1x5xf32>
    %cst_31 = arith.constant dense<0.000000e+00> : vector<1xf32>
    %169 = vector.multi_reduction <add>, %168, %cst_31 [1] : vector<1x5xf32> to vector<1xf32>
    %170 = vector.shape_cast %169 : vector<1xf32> to vector<1x1xf32>
    %171 = math.log %170 : vector<1x1xf32>
    %172 = vector.broadcast %171 : vector<1x1xf32> to vector<1x5xf32>
    %173 = arith.subf %167, %172 : vector<1x5xf32>
    %c0_32 = arith.constant 0 : index
    %c0_33 = arith.constant 0 : index
    %174 = vector.load %arg2[%c0_32, %c0_33] : memref<1x5xf32, #tpu.memory_space<vmem>>, vector<1x5xf32>
    tpu.vector_store %arg2[%c0_32, %c0_33], %173 {strides = array<i32>} : memref<1x5xf32, #tpu.memory_space<vmem>>, vector<1x5xf32>,
    return
  }
}

</mosaic_0001>

<llo_original>
// kernel: rnn_forward.1
$region0: #{rnn_forward.1}
  #allocation0 [shape = 'u32[]', space=smem, size = 0x4, offset = 0x4, fixed_abs, tag = 'smem constant byte address 0x4 - core index']
  #allocation1 [shape = 'u32[144,128]{1,0:T(1,128)}', space=vmem, size = 0x12000, scoped, tag = 'internal scratch']
  %s0 = inlined_call_operand.hbm [shape: f32[8,2,16], index: 0, kind: input, shape index: {}]
  %s1 = inlined_call_operand.hbm [shape: f32[136,128], index: 1, kind: input, shape index: {}]
  %s2 = inlined_call_operand.hbm [shape: f32[1,5], index: 2, kind: output, shape index: {}]
  %s3 = sld [smem:[#allocation0]]
  $region26: #{rnn_forward.1} parent=0
    _
  %s5 = ssub.s32 1, %s3
  %s6 = scalar_select 0, %s5, %s3
  $region1: #{rnn_forward.1} parent=0
    #allocation2 [shape = 'u8[8192]{0}', space=vmem, size = 0x2000, scoped, tag = 'input window, operand 0, single buffered']
    #allocation3 [shape = 's32[1]{0}', space=sflag, size = 0x4, scoped, tag = 'scoped memory for rnn_forward.1']
    #allocation4 [shape = 's32[1]{0}', space=sflag, size = 0x4, scoped, tag = 'scoped memory for rnn_forward.1']
    #allocation5 [shape = 'u8[69632]{0}', space=vmem, size = 0x11000, scoped, tag = 'input window, operand 1, single buffered']
    #allocation6 [shape = 's32[1]{0}', space=sflag, size = 0x4, scoped, tag = 'scoped memory for rnn_forward.1']
    #allocation7 [shape = 'u8[512]{0}', space=vmem, size = 0x400, scoped, tag = 'output window, operand 0, single buffered']
    %7 = vsyncpa [#allocation3], 0
    %8 = vsyncpa [#allocation6], 0
    %9 = vsyncpa [#allocation4], 0
    // Predicated region
    $region2: #{rnn_forward.1} parent=1 // pred_check
      _
    $region3: #{rnn_forward.1} parent=1 // pred_check_branch
      %11 = sbr.rel (0) target = $region5
    $region4: #{rnn_forward.1} parent=1 // pred_region
      %s13 = ssub.s32 256, 256
      %14 = vsyncadd [#allocation3], %s13
      %s15 = sshll.u32 [#allocation2], 4
      %s16 = int_to_ptr.vmem [resolvable:$true] %s15
      %21 = dma.hbm_to_vmem [thread:$0]  %s0, 256, %s16, [#allocation3], 32, 32, 2
    $region5: #{rnn_forward.1} parent=1 // pred_fallthru
      _
    // Predicated region
    $region6: #{rnn_forward.1} parent=1 // pred_check
      _
    $region7: #{rnn_forward.1} parent=1 // pred_check_branch
      %23 = sbr.rel (0) target = $region9
    $region8: #{rnn_forward.1} parent=1 // pred_region
      %s25 = ssub.s32 2176, 2176
      %26 = vsyncadd [#allocation6], %s25
      %s27 = sshll.u32 [#allocation5], 4
      %s28 = int_to_ptr.vmem [resolvable:$true] %s27
      %33 = dma.hbm_to_vmem [thread:$0]  %s1, 2176, %s28, [#allocation6], 128, 128, 8
    $region9: #{rnn_forward.1} parent=1 // pred_fallthru
      _
    // Predicated region
    $region10: #{rnn_forward.1} parent=1 // pred_check
      _
    $region11: #{rnn_forward.1} parent=1 // pred_check_branch
      %35 = sbr.rel (0) target = $region13
    $region12: #{rnn_forward.1} parent=1 // pred_region
      %36 = dma.done [#allocation3], 256
    $region13: #{rnn_forward.1} parent=1 // pred_fallthru
      _
    // Predicated region
    $region14: #{rnn_forward.1} parent=1 // pred_check
      _
    $region15: #{rnn_forward.1} parent=1 // pred_check_branch
      %38 = sbr.rel (0) target = $region17
    $region16: #{rnn_forward.1} parent=1 // pred_region
      %39 = dma.done [#allocation6], 2176
    $region17: #{rnn_forward.1} parent=1 // pred_fallthru
      _
    %v40 = vld [vmem:[#allocation2 + $0x1] sm:$0x1]
    %v41 = vld [vmem:[#allocation2 + $0x3] sm:$0x1]
    %v42 = vld [vmem:[#allocation2 + $0x5] sm:$0x1]
    %v43 = vld [vmem:[#allocation2 + $0x7] sm:$0x1]
    %v44 = vld [vmem:[#allocation2 + $0x9] sm:$0x1]
    %v45 = vld [vmem:[#allocation2 + $0xb] sm:$0x1]
    %v46 = vld [vmem:[#allocation2 + $0xd] sm:$0x1]
    %v47 = vld [vmem:[#allocation2 + $0xf] sm:$0x1]
    %v48 = vld [vmem:[#allocation5] sm:$0xff]
    %v49 = vld [vmem:[#allocation5 + $0x8] sm:$0xff]
    %v50 = vld [vmem:[#allocation5 + $0x10] sm:$0xff]
    %v51 = vld [vmem:[#allocation5 + $0x18] sm:$0xff]
    %v52 = vld [vmem:[#allocation5 + $0x20] sm:$0xff]
    %v53 = vld [vmem:[#allocation5 + $0x28] sm:$0xff]
    %v54 = vld [vmem:[#allocation5 + $0x30] sm:$0x1]
    %v55 = vlaneseq
    %v56 = vshrl.u32 %v55, 7
    %v57 = vsub.s32 0, %v56
    %v58 = vrot.slane %v54, %v57
    %v67 = vrot.slane %v41, 7
    %vm68 = vcmask 1041409
    %v69 = vsel %vm68, %v67, %v40
    %v70 = vrot.slane %v42, 6
    %vm71 = vcmask 1042434
    %v72 = vsel %vm71, %v70, %v69
    %v73 = vrot.slane %v43, 5
    %vm74 = vcmask 1043459
    %v75 = vsel %vm74, %v73, %v72
    %v76 = vrot.slane %v44, 4
    %vm77 = vcmask 1044484
    %v78 = vsel %vm77, %v76, %v75
    %v79 = vrot.slane %v45, 3
    %vm80 = vcmask 1045509
    %v81 = vsel %vm80, %v79, %v78
    %v82 = vrot.slane %v46, 2
    %vm83 = vcmask 1046534
    %v84 = vsel %vm83, %v82, %v81
    %v85 = vrot.slane %v47, 1
    %vm86 = vcmask 1047559
    %v87 = vsel %vm86, %v85, %v84
    %vm88 = vcmask 130048
    %v89 = vsel %vm88, %v87, 0
    %91 = vmatprep.subr.mxu0 0.0
    %92 = vmatpush1.msra.mxu0 %v48
    %93 = vmatprep.subr.mxu0 0.0
    %94 = vmatpush1.msra.mxu0 %v49
    %95 = vmatprep.subr.mxu0 0.0
    %96 = vmatpush1.msra.mxu0 0.0
    %97 = vmatprep.subr.mxu0 0.0
    %98 = vmatpush1.msra.mxu0 0.0
    %99 = vmatprep.subr.mxu0 0.0
    %100 = vmatpush1.msra.mxu0 0.0
    %101 = vmatprep.subr.mxu0 0.0
    %102 = vmatpush1.msra.mxu0 0.0
    %103 = vmatprep.subr.mxu0 0.0
    %104 = vmatpush1.msra.mxu0 0.0
    %105 = vmatprep.subr.mxu0 0.0
    %106 = vmatpush1.msra.mxu0 0.0
    %107 = vmatprep.subr.mxu0 0.0
    %108 = vmatpush1.msra.mxu0 0.0
    %109 = vmatprep.subr.mxu0 0.0
    %110 = vmatpush1.msra.mxu0 0.0
    %111 = vmatprep.subr.mxu0 0.0
    %112 = vmatpush1.msra.mxu0 0.0
    %113 = vmatprep.subr.mxu0 0.0
    %114 = vmatpush1.msra.mxu0 0.0
    %115 = vmatprep.subr.mxu0 0.0
    %116 = vmatpush1.msra.mxu0 0.0
    %117 = vmatprep.subr.mxu0 0.0
    %118 = vmatpush1.msra.mxu0 0.0
    %119 = vmatprep.subr.mxu0 0.0
    %120 = vmatpush1.msra.mxu0 0.0
    %121 = vmatprep.subr.mxu0 0.0
    %122 = vmatpush1.msra.mxu0 0.0
    %123 = vmatprep.subr.mxu0 0.0
    %124 = vmatpush1.msra.mxu0 0.0
    %125 = vmatprep.subr.mxu0 0.0
    %126 = vmatpush1.msra.mxu0 0.0
    %127 = vmatprep.subr.mxu0 0.0
    %128 = vmatpush1.msra.mxu0 0.0
    %129 = vmatprep.subr.mxu0 0.0
    %130 = vmatpush1.msra.mxu0 0.0
    %131 = vmatprep.subr.mxu0 0.0
    %132 = vmatpush1.msra.mxu0 0.0
    %133 = vmatprep.subr.mxu0 0.0
    %134 = vmatpush1.msra.mxu0 0.0
    %135 = vmatprep.subr.mxu0 0.0
    %136 = vmatpush1.msra.mxu0 0.0
    %137 = vmatprep.subr.mxu0 0.0
    %138 = vmatpush1.msra.mxu0 0.0
    %139 = vmatprep.subr.mxu0 0.0
    %140 = vmatpush1.msra.mxu0 0.0
    %141 = vmatprep.subr.mxu0 0.0
    %142 = vmatpush1.msra.mxu0 0.0
    %143 = vmatprep.subr.mxu0 0.0
    %144 = vmatpush1.msra.mxu0 0.0
    %145 = vmatprep.subr.mxu0 0.0
    %146 = vmatpush1.msra.mxu0 0.0
    %147 = vmatprep.subr.mxu0 0.0
    %148 = vmatpush1.msra.mxu0 0.0
    %149 = vmatprep.subr.mxu0 0.0
    %150 = vmatpush1.msra.mxu0 0.0
    %151 = vmatprep.subr.mxu0 0.0
    %152 = vmatpush1.msra.mxu0 0.0
    %153 = vmatprep.subr.mxu0 0.0
    %154 = vmatpush1.msra.mxu0 0.0
    %155 = vmatprep.mubr.f32.mxu0 0.0
    %156 = vmatmul.mubr.f32.gmra.mrb[0].mxu0 %v89
    %v157 = vpop.f32.mrb[0].mxu0
    %v158 = vadd.f32 %v58, %v157
    %v159 = vpop.f32.mrb[0].mxu0
    %160 = vdwg.mxu0
    %vm161 = vcmask 261120
    %v163 = vsel %vm161, 0.0, 0
    %165 = vmatprep.subr.mxu0 0.0
    %166 = vmatpush1.msra.mxu0 %v50
    %167 = vmatprep.subr.mxu0 0.0
    %168 = vmatpush1.msra.mxu0 %v51
    %169 = vmatprep.subr.mxu0 0.0
    %170 = vmatpush1.msra.mxu0 %v52
    %171 = vmatprep.subr.mxu0 0.0
    %172 = vmatpush1.msra.mxu0 %v53
    %173 = vmatprep.subr.mxu0 0.0
    %174 = vmatpush1.msra.mxu0 0.0
    %175 = vmatprep.subr.mxu0 0.0
    %176 = vmatpush1.msra.mxu0 0.0
    %177 = vmatprep.subr.mxu0 0.0
    %178 = vmatpush1.msra.mxu0 0.0
    %179 = vmatprep.subr.mxu0 0.0
    %180 = vmatpush1.msra.mxu0 0.0
    %181 = vmatprep.subr.mxu0 0.0
    %182 = vmatpush1.msra.mxu0 0.0
    %183 = vmatprep.subr.mxu0 0.0
    %184 = vmatpush1.msra.mxu0 0.0
    %185 = vmatprep.subr.mxu0 0.0
    %186 = vmatpush1.msra.mxu0 0.0
    %187 = vmatprep.subr.mxu0 0.0
    %188 = vmatpush1.msra.mxu0 0.0
    %189 = vmatprep.subr.mxu0 0.0
    %190 = vmatpush1.msra.mxu0 0.0
    %191 = vmatprep.subr.mxu0 0.0
    %192 = vmatpush1.msra.mxu0 0.0
    %193 = vmatprep.subr.mxu0 0.0
    %194 = vmatpush1.msra.mxu0 0.0
    %195 = vmatprep.subr.mxu0 0.0
    %196 = vmatpush1.msra.mxu0 0.0
    %197 = vmatprep.subr.mxu0 0.0
    %198 = vmatpush1.msra.mxu0 0.0
    %199 = vmatprep.subr.mxu0 0.0
    %200 = vmatpush1.msra.mxu0 0.0
    %201 = vmatprep.subr.mxu0 0.0
    %202 = vmatpush1.msra.mxu0 0.0
    %203 = vmatprep.subr.mxu0 0.0
    %204 = vmatpush1.msra.mxu0 0.0
    %205 = vmatprep.subr.mxu0 0.0
    %206 = vmatpush1.msra.mxu0 0.0
    %207 = vmatprep.subr.mxu0 0.0
    %208 = vmatpush1.msra.mxu0 0.0
    %209 = vmatprep.subr.mxu0 0.0
    %210 = vmatpush1.msra.mxu0 0.0
    %211 = vmatprep.subr.mxu0 0.0
    %212 = vmatpush1.msra.mxu0 0.0
    %213 = vmatprep.subr.mxu0 0.0
    %214 = vmatpush1.msra.mxu0 0.0
    %215 = vmatprep.subr.mxu0 0.0
    %216 = vmatpush1.msra.mxu0 0.0
    %217 = vmatprep.subr.mxu0 0.0
    %218 = vmatpush1.msra.mxu0 0.0
    %219 = vmatprep.subr.mxu0 0.0
    %220 = vmatpush1.msra.mxu0 0.0
    %221 = vmatprep.subr.mxu0 0.0
    %222 = vmatpush1.msra.mxu0 0.0
    %223 = vmatprep.subr.mxu0 0.0
    %224 = vmatpush1.msra.mxu0 0.0
    %225 = vmatprep.subr.mxu0 0.0
    %226 = vmatpush1.msra.mxu0 0.0
    %227 = vmatprep.subr.mxu0 0.0
    %228 = vmatpush1.msra.mxu0 0.0
    %229 = vmatprep.mubr.f32.mxu0 0.0
    %230 = vmatmul.mubr.f32.gmra.mrb[0].mxu0 %v163
    %v231 = vpop.f32.mrb[0].mxu0
    %v232 = vadd.f32 0.0, %v231
    %v233 = vpop.f32.mrb[0].mxu0
    %234 = vdwg.mxu0
    %v235 = vadd.f32 %v158, %v232
    %v236 = vxor.u32 %v235, 2147483648
    %v237 = vmul.f32 %v236, 1.442695
    %v238 = vpow.pop %v237
    %v239 = vadd.f32 %v238, 1.0
    %v240 = vrcp.pop %v239
    %v241 = vmul.f32 1.0, %v240
    %v242 = vtanh.pop %v235
    %v243 = vmul.f32 %v241, 0.0
    %245 = vrot.lane.b32.xlu0 %v242, 64
    %v246 = vpop.permute.xlu0 %245
    %v248 = vmul.f32 %v241, %v246
    %250 = vrot.lane.b32.xlu0 %v248, 32
    %v251 = vpop.permute.xlu0 %250
    %v253 = vadd.f32 %v243, %v251
    %v254 = vtanh.pop %v253
    %256 = vrot.lane.b32.xlu0 %v254, 64
    %v257 = vpop.permute.xlu0 %256
    %v259 = vmul.f32 %v241, %v257
    %261 = vrot.lane.b32.xlu0 %v259, 32
    %v262 = vpop.permute.xlu0 %261
    %v263 = vsel %vm161, %v262, 0
    %265 = vmatprep.subr.mxu0 0.0
    %266 = vmatpush1.msra.mxu0 %v50
    %267 = vmatprep.subr.mxu0 0.0
    %268 = vmatpush1.msra.mxu0 %v51
    %269 = vmatprep.subr.mxu0 0.0
    %270 = vmatpush1.msra.mxu0 %v52
    %271 = vmatprep.subr.mxu0 0.0
    %272 = vmatpush1.msra.mxu0 %v53
    %273 = vmatprep.subr.mxu0 0.0
    %274 = vmatpush1.msra.mxu0 0.0
    %275 = vmatprep.subr.mxu0 0.0
    %276 = vmatpush1.msra.mxu0 0.0
    %277 = vmatprep.subr.mxu0 0.0
    %278 = vmatpush1.msra.mxu0 0.0
    %279 = vmatprep.subr.mxu0 0.0
    %280 = vmatpush1.msra.mxu0 0.0
    %281 = vmatprep.subr.mxu0 0.0
    %282 = vmatpush1.msra.mxu0 0.0
    %283 = vmatprep.subr.mxu0 0.0
    %284 = vmatpush1.msra.mxu0 0.0
    %285 = vmatprep.subr.mxu0 0.0
    %286 = vmatpush1.msra.mxu0 0.0
    %287 = vmatprep.subr.mxu0 0.0
    %288 = vmatpush1.msra.mxu0 0.0
    %289 = vmatprep.subr.mxu0 0.0
    %290 = vmatpush1.msra.mxu0 0.0
    %291 = vmatprep.subr.mxu0 0.0
    %292 = vmatpush1.msra.mxu0 0.0
    %293 = vmatprep.subr.mxu0 0.0
    %294 = vmatpush1.msra.mxu0 0.0
    %295 = vmatprep.subr.mxu0 0.0
    %296 = vmatpush1.msra.mxu0 0.0
    %297 = vmatprep.subr.mxu0 0.0
    %298 = vmatpush1.msra.mxu0 0.0
    %299 = vmatprep.subr.mxu0 0.0
    %300 = vmatpush1.msra.mxu0 0.0
    %301 = vmatprep.subr.mxu0 0.0
    %302 = vmatpush1.msra.mxu0 0.0
    %303 = vmatprep.subr.mxu0 0.0
    %304 = vmatpush1.msra.mxu0 0.0
    %305 = vmatprep.subr.mxu0 0.0
    %306 = vmatpush1.msra.mxu0 0.0
    %307 = vmatprep.subr.mxu0 0.0
    %308 = vmatpush1.msra.mxu0 0.0
    %309 = vmatprep.subr.mxu0 0.0
    %310 = vmatpush1.msra.mxu0 0.0
    %311 = vmatprep.subr.mxu0 0.0
    %312 = vmatpush1.msra.mxu0 0.0
    %313 = vmatprep.subr.mxu0 0.0
    %314 = vmatpush1.msra.mxu0 0.0
    %315 = vmatprep.subr.mxu0 0.0
    %316 = vmatpush1.msra.mxu0 0.0
    %317 = vmatprep.subr.mxu0 0.0
    %318 = vmatpush1.msra.mxu0 0.0
    %319 = vmatprep.subr.mxu0 0.0
    %320 = vmatpush1.msra.mxu0 0.0
    %321 = vmatprep.subr.mxu0 0.0
    %322 = vmatpush1.msra.mxu0 0.0
    %323 = vmatprep.subr.mxu0 0.0
    %324 = vmatpush1.msra.mxu0 0.0
    %325 = vmatprep.subr.mxu0 0.0
    %326 = vmatpush1.msra.mxu0 0.0
    %327 = vmatprep.subr.mxu0 0.0
    %328 = vmatpush1.msra.mxu0 0.0
    %329 = vmatprep.mubr.f32.mxu0 0.0
    %330 = vmatmul.mubr.f32.gmra.mrb[0].mxu0 %v263
    %v331 = vpop.f32.mrb[0].mxu0
    %v332 = vadd.f32 0.0, %v331
    %v333 = vpop.f32.mrb[0].mxu0
    %334 = vdwg.mxu0
    %v336 = vrot.slane %v332, 7
    %v338 = vadd.f32 %v158, %v336
    %v339 = vxor.u32 %v338, 2147483648
    %v340 = vmul.f32 %v339, 1.442695
    %v341 = vpow.pop %v340
    %v342 = vadd.f32 %v341, 1.0
    %v343 = vrcp.pop %v342
    %v344 = vmul.f32 1.0, %v343
    %v345 = vtanh.pop %v338
    %v347 = vrot.slane %v253, 7
    %v349 = vmul.f32 %v344, %v347
    %351 = vrot.lane.b32.xlu0 %v345, 64
    %v352 = vpop.permute.xlu0 %351
    %v354 = vmul.f32 %v344, %v352
    %356 = vrot.lane.b32.xlu0 %v354, 32
    %v357 = vpop.permute.xlu0 %356
    %v359 = vadd.f32 %v349, %v357
    %v360 = vtanh.pop %v359
    %362 = vrot.lane.b32.xlu0 %v360, 64
    %v363 = vpop.permute.xlu0 %362
    %v365 = vmul.f32 %v344, %v363
    %v367 = vrot.slane %v365, 1
    %368 = vrot.lane.b32.xlu0 %v367, 32
    %v369 = vpop.permute.xlu0 %368
    %v370 = vsel %vm161, %v369, 0
    %372 = vmatprep.subr.mxu0 0.0
    %373 = vmatpush1.msra.mxu0 %v50
    %374 = vmatprep.subr.mxu0 0.0
    %375 = vmatpush1.msra.mxu0 %v51
    %376 = vmatprep.subr.mxu0 0.0
    %377 = vmatpush1.msra.mxu0 %v52
    %378 = vmatprep.subr.mxu0 0.0
    %379 = vmatpush1.msra.mxu0 %v53
    %380 = vmatprep.subr.mxu0 0.0
    %381 = vmatpush1.msra.mxu0 0.0
    %382 = vmatprep.subr.mxu0 0.0
    %383 = vmatpush1.msra.mxu0 0.0
    %384 = vmatprep.subr.mxu0 0.0
    %385 = vmatpush1.msra.mxu0 0.0
    %386 = vmatprep.subr.mxu0 0.0
    %387 = vmatpush1.msra.mxu0 0.0
    %388 = vmatprep.subr.mxu0 0.0
    %389 = vmatpush1.msra.mxu0 0.0
    %390 = vmatprep.subr.mxu0 0.0
    %391 = vmatpush1.msra.mxu0 0.0
    %392 = vmatprep.subr.mxu0 0.0
    %393 = vmatpush1.msra.mxu0 0.0
    %394 = vmatprep.subr.mxu0 0.0
    %395 = vmatpush1.msra.mxu0 0.0
    %396 = vmatprep.subr.mxu0 0.0
    %397 = vmatpush1.msra.mxu0 0.0
    %398 = vmatprep.subr.mxu0 0.0
    %399 = vmatpush1.msra.mxu0 0.0
    %400 = vmatprep.subr.mxu0 0.0
    %401 = vmatpush1.msra.mxu0 0.0
    %402 = vmatprep.subr.mxu0 0.0
    %403 = vmatpush1.msra.mxu0 0.0
    %404 = vmatprep.subr.mxu0 0.0
    %405 = vmatpush1.msra.mxu0 0.0
    %406 = vmatprep.subr.mxu0 0.0
    %407 = vmatpush1.msra.mxu0 0.0
    %408 = vmatprep.subr.mxu0 0.0
    %409 = vmatpush1.msra.mxu0 0.0
    %410 = vmatprep.subr.mxu0 0.0
    %411 = vmatpush1.msra.mxu0 0.0
    %412 = vmatprep.subr.mxu0 0.0
    %413 = vmatpush1.msra.mxu0 0.0
    %414 = vmatprep.subr.mxu0 0.0
    %415 = vmatpush1.msra.mxu0 0.0
    %416 = vmatprep.subr.mxu0 0.0
    %417 = vmatpush1.msra.mxu0 0.0
    %418 = vmatprep.subr.mxu0 0.0
    %419 = vmatpush1.msra.mxu0 0.0
    %420 = vmatprep.subr.mxu0 0.0
    %421 = vmatpush1.msra.mxu0 0.0
    %422 = vmatprep.subr.mxu0 0.0
    %423 = vmatpush1.msra.mxu0 0.0
    %424 = vmatprep.subr.mxu0 0.0
    %425 = vmatpush1.msra.mxu0 0.0
    %426 = vmatprep.subr.mxu0 0.0
    %427 = vmatpush1.msra.mxu0 0.0
    %428 = vmatprep.subr.mxu0 0.0
    %429 = vmatpush1.msra.mxu0 0.0
    %430 = vmatprep.subr.mxu0 0.0
    %431 = vmatpush1.msra.mxu0 0.0
    %432 = vmatprep.subr.mxu0 0.0
    %433 = vmatpush1.msra.mxu0 0.0
    %434 = vmatprep.subr.mxu0 0.0
    %435 = vmatpush1.msra.mxu0 0.0
    %436 = vmatprep.mubr.f32.mxu0 0.0
    %437 = vmatmul.mubr.f32.gmra.mrb[0].mxu0 %v370
    %v438 = vpop.f32.mrb[0].mxu0
    %v439 = vadd.f32 0.0, %v438
    %v440 = vpop.f32.mrb[0].mxu0
    %441 = vdwg.mxu0
    %v443 = vrot.slane %v439, 6
    %v445 = vadd.f32 %v158, %v443
    %v446 = vxor.u32 %v445, 2147483648
    %v447 = vmul.f32 %v446, 1.442695
    %v448 = vpow.pop %v447
    %v449 = vadd.f32 %v448, 1.0
    %v450 = vrcp.pop %v449
    %v451 = vmul.f32 1.0, %v450
    %v452 = vtanh.pop %v445
    %v454 = vrot.slane %v359, 7
    %v456 = vmul.f32 %v451, %v454
    %458 = vrot.lane.b32.xlu0 %v452, 64
    %v459 = vpop.permute.xlu0 %458
    %v461 = vmul.f32 %v451, %v459
    %463 = vrot.lane.b32.xlu0 %v461, 32
    %v464 = vpop.permute.xlu0 %463
    %v466 = vadd.f32 %v456, %v464
    %v467 = vtanh.pop %v466
    %469 = vrot.lane.b32.xlu0 %v467, 64
    %v470 = vpop.permute.xlu0 %469
    %v472 = vmul.f32 %v451, %v470
    %v474 = vrot.slane %v472, 2
    %475 = vrot.lane.b32.xlu0 %v474, 32
    %v476 = vpop.permute.xlu0 %475
    %v477 = vsel %vm161, %v476, 0
    %479 = vmatprep.subr.mxu0 0.0
    %480 = vmatpush1.msra.mxu0 %v50
    %481 = vmatprep.subr.mxu0 0.0
    %482 = vmatpush1.msra.mxu0 %v51
    %483 = vmatprep.subr.mxu0 0.0
    %484 = vmatpush1.msra.mxu0 %v52
    %485 = vmatprep.subr.mxu0 0.0
    %486 = vmatpush1.msra.mxu0 %v53
    %487 = vmatprep.subr.mxu0 0.0
    %488 = vmatpush1.msra.mxu0 0.0
    %489 = vmatprep.subr.mxu0 0.0
    %490 = vmatpush1.msra.mxu0 0.0
    %491 = vmatprep.subr.mxu0 0.0
    %492 = vmatpush1.msra.mxu0 0.0
    %493 = vmatprep.subr.mxu0 0.0
    %494 = vmatpush1.msra.mxu0 0.0
    %495 = vmatprep.subr.mxu0 0.0
    %496 = vmatpush1.msra.mxu0 0.0
    %497 = vmatprep.subr.mxu0 0.0
    %498 = vmatpush1.msra.mxu0 0.0
    %499 = vmatprep.subr.mxu0 0.0
    %500 = vmatpush1.msra.mxu0 0.0
    %501 = vmatprep.subr.mxu0 0.0
    %502 = vmatpush1.msra.mxu0 0.0
    %503 = vmatprep.subr.mxu0 0.0
    %504 = vmatpush1.msra.mxu0 0.0
    %505 = vmatprep.subr.mxu0 0.0
    %506 = vmatpush1.msra.mxu0 0.0
    %507 = vmatprep.subr.mxu0 0.0
    %508 = vmatpush1.msra.mxu0 0.0
    %509 = vmatprep.subr.mxu0 0.0
    %510 = vmatpush1.msra.mxu0 0.0
    %511 = vmatprep.subr.mxu0 0.0
    %512 = vmatpush1.msra.mxu0 0.0
    %513 = vmatprep.subr.mxu0 0.0
    %514 = vmatpush1.msra.mxu0 0.0
    %515 = vmatprep.subr.mxu0 0.0
    %516 = vmatpush1.msra.mxu0 0.0
    %517 = vmatprep.subr.mxu0 0.0
    %518 = vmatpush1.msra.mxu0 0.0
    %519 = vmatprep.subr.mxu0 0.0
    %520 = vmatpush1.msra.mxu0 0.0
    %521 = vmatprep.subr.mxu0 0.0
    %522 = vmatpush1.msra.mxu0 0.0
    %523 = vmatprep.subr.mxu0 0.0
    %524 = vmatpush1.msra.mxu0 0.0
    %525 = vmatprep.subr.mxu0 0.0
    %526 = vmatpush1.msra.mxu0 0.0
    %527 = vmatprep.subr.mxu0 0.0
    %528 = vmatpush1.msra.mxu0 0.0
    %529 = vmatprep.subr.mxu0 0.0
    %530 = vmatpush1.msra.mxu0 0.0
    %531 = vmatprep.subr.mxu0 0.0
    %532 = vmatpush1.msra.mxu0 0.0
    %533 = vmatprep.subr.mxu0 0.0
    %534 = vmatpush1.msra.mxu0 0.0
    %535 = vmatprep.subr.mxu0 0.0
    %536 = vmatpush1.msra.mxu0 0.0
    %537 = vmatprep.subr.mxu0 0.0
    %538 = vmatpush1.msra.mxu0 0.0
    %539 = vmatprep.subr.mxu0 0.0
    %540 = vmatpush1.msra.mxu0 0.0
    %541 = vmatprep.subr.mxu0 0.0
    %542 = vmatpush1.msra.mxu0 0.0
    %543 = vmatprep.mubr.f32.mxu0 0.0
    %544 = vmatmul.mubr.f32.gmra.mrb[0].mxu0 %v477
    %v545 = vpop.f32.mrb[0].mxu0
    %v546 = vadd.f32 0.0, %v545
    %v547 = vpop.f32.mrb[0].mxu0
    %548 = vdwg.mxu0
    %v550 = vrot.slane %v546, 5
    %v552 = vadd.f32 %v158, %v550
    %v553 = vxor.u32 %v552, 2147483648
    %v554 = vmul.f32 %v553, 1.442695
    %v555 = vpow.pop %v554
    %v556 = vadd.f32 %v555, 1.0
    %v557 = vrcp.pop %v556
    %v558 = vmul.f32 1.0, %v557
    %v559 = vtanh.pop %v552
    %v561 = vrot.slane %v466, 7
    %v563 = vmul.f32 %v558, %v561
    %565 = vrot.lane.b32.xlu0 %v559, 64
    %v566 = vpop.permute.xlu0 %565
    %v568 = vmul.f32 %v558, %v566
    %570 = vrot.lane.b32.xlu0 %v568, 32
    %v571 = vpop.permute.xlu0 %570
    %v573 = vadd.f32 %v563, %v571
    %v574 = vtanh.pop %v573
    %576 = vrot.lane.b32.xlu0 %v574, 64
    %v577 = vpop.permute.xlu0 %576
    %v579 = vmul.f32 %v558, %v577
    %v581 = vrot.slane %v579, 3
    %582 = vrot.lane.b32.xlu0 %v581, 32
    %v583 = vpop.permute.xlu0 %582
    %v584 = vsel %vm161, %v583, 0
    %586 = vmatprep.subr.mxu0 0.0
    %587 = vmatpush1.msra.mxu0 %v50
    %588 = vmatprep.subr.mxu0 0.0
    %589 = vmatpush1.msra.mxu0 %v51
    %590 = vmatprep.subr.mxu0 0.0
    %591 = vmatpush1.msra.mxu0 %v52
    %592 = vmatprep.subr.mxu0 0.0
    %593 = vmatpush1.msra.mxu0 %v53
    %594 = vmatprep.subr.mxu0 0.0
    %595 = vmatpush1.msra.mxu0 0.0
    %596 = vmatprep.subr.mxu0 0.0
    %597 = vmatpush1.msra.mxu0 0.0
    %598 = vmatprep.subr.mxu0 0.0
    %599 = vmatpush1.msra.mxu0 0.0
    %600 = vmatprep.subr.mxu0 0.0
    %601 = vmatpush1.msra.mxu0 0.0
    %602 = vmatprep.subr.mxu0 0.0
    %603 = vmatpush1.msra.mxu0 0.0
    %604 = vmatprep.subr.mxu0 0.0
    %605 = vmatpush1.msra.mxu0 0.0
    %606 = vmatprep.subr.mxu0 0.0
    %607 = vmatpush1.msra.mxu0 0.0
    %608 = vmatprep.subr.mxu0 0.0
    %609 = vmatpush1.msra.mxu0 0.0
    %610 = vmatprep.subr.mxu0 0.0
    %611 = vmatpush1.msra.mxu0 0.0
    %612 = vmatprep.subr.mxu0 0.0
    %613 = vmatpush1.msra.mxu0 0.0
    %614 = vmatprep.subr.mxu0 0.0
    %615 = vmatpush1.msra.mxu0 0.0
    %616 = vmatprep.subr.mxu0 0.0
    %617 = vmatpush1.msra.mxu0 0.0
    %618 = vmatprep.subr.mxu0 0.0
    %619 = vmatpush1.msra.mxu0 0.0
    %620 = vmatprep.subr.mxu0 0.0
    %621 = vmatpush1.msra.mxu0 0.0
    %622 = vmatprep.subr.mxu0 0.0
    %623 = vmatpush1.msra.mxu0 0.0
    %624 = vmatprep.subr.mxu0 0.0
    %625 = vmatpush1.msra.mxu0 0.0
    %626 = vmatprep.subr.mxu0 0.0
    %627 = vmatpush1.msra.mxu0 0.0
    %628 = vmatprep.subr.mxu0 0.0
    %629 = vmatpush1.msra.mxu0 0.0
    %630 = vmatprep.subr.mxu0 0.0
    %631 = vmatpush1.msra.mxu0 0.0
    %632 = vmatprep.subr.mxu0 0.0
    %633 = vmatpush1.msra.mxu0 0.0
    %634 = vmatprep.subr.mxu0 0.0
    %635 = vmatpush1.msra.mxu0 0.0
    %636 = vmatprep.subr.mxu0 0.0
    %637 = vmatpush1.msra.mxu0 0.0
    %638 = vmatprep.subr.mxu0 0.0
    %639 = vmatpush1.msra.mxu0 0.0
    %640 = vmatprep.subr.mxu0 0.0
    %641 = vmatpush1.msra.mxu0 0.0
    %642 = vmatprep.subr.mxu0 0.0
    %643 = vmatpush1.msra.mxu0 0.0
    %644 = vmatprep.subr.mxu0 0.0
    %645 = vmatpush1.msra.mxu0 0.0
    %646 = vmatprep.subr.mxu0 0.0
    %647 = vmatpush1.msra.mxu0 0.0
    %648 = vmatprep.subr.mxu0 0.0
    %649 = vmatpush1.msra.mxu0 0.0
    %650 = vmatprep.mubr.f32.mxu0 0.0
    %651 = vmatmul.mubr.f32.gmra.mrb[0].mxu0 %v584
    %v652 = vpop.f32.mrb[0].mxu0
    %v653 = vadd.f32 0.0, %v652
    %v654 = vpop.f32.mrb[0].mxu0
    %655 = vdwg.mxu0
    %v657 = vrot.slane %v653, 4
    %v659 = vadd.f32 %v158, %v657
    %v660 = vxor.u32 %v659, 2147483648
    %v661 = vmul.f32 %v660, 1.442695
    %v662 = vpow.pop %v661
    %v663 = vadd.f32 %v662, 1.0
    %v664 = vrcp.pop %v663
    %v665 = vmul.f32 1.0, %v664
    %v666 = vtanh.pop %v659
    %v668 = vrot.slane %v573, 7
    %v670 = vmul.f32 %v665, %v668
    %672 = vrot.lane.b32.xlu0 %v666, 64
    %v673 = vpop.permute.xlu0 %672
    %v675 = vmul.f32 %v665, %v673
    %677 = vrot.lane.b32.xlu0 %v675, 32
    %v678 = vpop.permute.xlu0 %677
    %v680 = vadd.f32 %v670, %v678
    %v681 = vtanh.pop %v680
    %683 = vrot.lane.b32.xlu0 %v681, 64
    %v684 = vpop.permute.xlu0 %683
    %v686 = vmul.f32 %v665, %v684
    %v688 = vrot.slane %v686, 4
    %689 = vrot.lane.b32.xlu0 %v688, 32
    %v690 = vpop.permute.xlu0 %689
    %v691 = vsel %vm161, %v690, 0
    %693 = vmatprep.subr.mxu0 0.0
    %694 = vmatpush1.msra.mxu0 %v50
    %695 = vmatprep.subr.mxu0 0.0
    %696 = vmatpush1.msra.mxu0 %v51
    %697 = vmatprep.subr.mxu0 0.0
    %698 = vmatpush1.msra.mxu0 %v52
    %699 = vmatprep.subr.mxu0 0.0
    %700 = vmatpush1.msra.mxu0 %v53
    %701 = vmatprep.subr.mxu0 0.0
    %702 = vmatpush1.msra.mxu0 0.0
    %703 = vmatprep.subr.mxu0 0.0
    %704 = vmatpush1.msra.mxu0 0.0
    %705 = vmatprep.subr.mxu0 0.0
    %706 = vmatpush1.msra.mxu0 0.0
    %707 = vmatprep.subr.mxu0 0.0
    %708 = vmatpush1.msra.mxu0 0.0
    %709 = vmatprep.subr.mxu0 0.0
    %710 = vmatpush1.msra.mxu0 0.0
    %711 = vmatprep.subr.mxu0 0.0
    %712 = vmatpush1.msra.mxu0 0.0
    %713 = vmatprep.subr.mxu0 0.0
    %714 = vmatpush1.msra.mxu0 0.0
    %715 = vmatprep.subr.mxu0 0.0
    %716 = vmatpush1.msra.mxu0 0.0
    %717 = vmatprep.subr.mxu0 0.0
    %718 = vmatpush1.msra.mxu0 0.0
    %719 = vmatprep.subr.mxu0 0.0
    %720 = vmatpush1.msra.mxu0 0.0
    %721 = vmatprep.subr.mxu0 0.0
    %722 = vmatpush1.msra.mxu0 0.0
    %723 = vmatprep.subr.mxu0 0.0
    %724 = vmatpush1.msra.mxu0 0.0
    %725 = vmatprep.subr.mxu0 0.0
    %726 = vmatpush1.msra.mxu0 0.0
    %727 = vmatprep.subr.mxu0 0.0
    %728 = vmatpush1.msra.mxu0 0.0
    %729 = vmatprep.subr.mxu0 0.0
    %730 = vmatpush1.msra.mxu0 0.0
    %731 = vmatprep.subr.mxu0 0.0
    %732 = vmatpush1.msra.mxu0 0.0
    %733 = vmatprep.subr.mxu0 0.0
    %734 = vmatpush1.msra.mxu0 0.0
    %735 = vmatprep.subr.mxu0 0.0
    %736 = vmatpush1.msra.mxu0 0.0
    %737 = vmatprep.subr.mxu0 0.0
    %738 = vmatpush1.msra.mxu0 0.0
    %739 = vmatprep.subr.mxu0 0.0
    %740 = vmatpush1.msra.mxu0 0.0
    %741 = vmatprep.subr.mxu0 0.0
    %742 = vmatpush1.msra.mxu0 0.0
    %743 = vmatprep.subr.mxu0 0.0
    %744 = vmatpush1.msra.mxu0 0.0
    %745 = vmatprep.subr.mxu0 0.0
    %746 = vmatpush1.msra.mxu0 0.0
    %747 = vmatprep.subr.mxu0 0.0
    %748 = vmatpush1.msra.mxu0 0.0
    %749 = vmatprep.subr.mxu0 0.0
    %750 = vmatpush1.msra.mxu0 0.0
    %751 = vmatprep.subr.mxu0 0.0
    %752 = vmatpush1.msra.mxu0 0.0
    %753 = vmatprep.subr.mxu0 0.0
    %754 = vmatpush1.msra.mxu0 0.0
    %755 = vmatprep.subr.mxu0 0.0
    %756 = vmatpush1.msra.mxu0 0.0
    %757 = vmatprep.mubr.f32.mxu0 0.0
    %758 = vmatmul.mubr.f32.gmra.mrb[0].mxu0 %v691
    %v759 = vpop.f32.mrb[0].mxu0
    %v760 = vadd.f32 0.0, %v759
    %v761 = vpop.f32.mrb[0].mxu0
    %762 = vdwg.mxu0
    %v764 = vrot.slane %v760, 3
    %v766 = vadd.f32 %v158, %v764
    %v767 = vxor.u32 %v766, 2147483648
    %v768 = vmul.f32 %v767, 1.442695
    %v769 = vpow.pop %v768
    %v770 = vadd.f32 %v769, 1.0
    %v771 = vrcp.pop %v770
    %v772 = vmul.f32 1.0, %v771
    %v773 = vtanh.pop %v766
    %v775 = vrot.slane %v680, 7
    %v777 = vmul.f32 %v772, %v775
    %779 = vrot.lane.b32.xlu0 %v773, 64
    %v780 = vpop.permute.xlu0 %779
    %v782 = vmul.f32 %v772, %v780
    %784 = vrot.lane.b32.xlu0 %v782, 32
    %v785 = vpop.permute.xlu0 %784
    %v787 = vadd.f32 %v777, %v785
    %v788 = vtanh.pop %v787
    %790 = vrot.lane.b32.xlu0 %v788, 64
    %v791 = vpop.permute.xlu0 %790
    %v793 = vmul.f32 %v772, %v791
    %v795 = vrot.slane %v793, 5
    %796 = vrot.lane.b32.xlu0 %v795, 32
    %v797 = vpop.permute.xlu0 %796
    %v798 = vsel %vm161, %v797, 0
    %800 = vmatprep.subr.mxu0 0.0
    %801 = vmatpush1.msra.mxu0 %v50
    %802 = vmatprep.subr.mxu0 0.0
    %803 = vmatpush1.msra.mxu0 %v51
    %804 = vmatprep.subr.mxu0 0.0
    %805 = vmatpush1.msra.mxu0 %v52
    %806 = vmatprep.subr.mxu0 0.0
    %807 = vmatpush1.msra.mxu0 %v53
    %808 = vmatprep.subr.mxu0 0.0
    %809 = vmatpush1.msra.mxu0 0.0
    %810 = vmatprep.subr.mxu0 0.0
    %811 = vmatpush1.msra.mxu0 0.0
    %812 = vmatprep.subr.mxu0 0.0
    %813 = vmatpush1.msra.mxu0 0.0
    %814 = vmatprep.subr.mxu0 0.0
    %815 = vmatpush1.msra.mxu0 0.0
    %816 = vmatprep.subr.mxu0 0.0
    %817 = vmatpush1.msra.mxu0 0.0
    %818 = vmatprep.subr.mxu0 0.0
    %819 = vmatpush1.msra.mxu0 0.0
    %820 = vmatprep.subr.mxu0 0.0
    %821 = vmatpush1.msra.mxu0 0.0
    %822 = vmatprep.subr.mxu0 0.0
    %823 = vmatpush1.msra.mxu0 0.0
    %824 = vmatprep.subr.mxu0 0.0
    %825 = vmatpush1.msra.mxu0 0.0
    %826 = vmatprep.subr.mxu0 0.0
    %827 = vmatpush1.msra.mxu0 0.0
    %828 = vmatprep.subr.mxu0 0.0
    %829 = vmatpush1.msra.mxu0 0.0
    %830 = vmatprep.subr.mxu0 0.0
    %831 = vmatpush1.msra.mxu0 0.0
    %832 = vmatprep.subr.mxu0 0.0
    %833 = vmatpush1.msra.mxu0 0.0
    %834 = vmatprep.subr.mxu0 0.0
    %835 = vmatpush1.msra.mxu0 0.0
    %836 = vmatprep.subr.mxu0 0.0
    %837 = vmatpush1.msra.mxu0 0.0
    %838 = vmatprep.subr.mxu0 0.0
    %839 = vmatpush1.msra.mxu0 0.0
    %840 = vmatprep.subr.mxu0 0.0
    %841 = vmatpush1.msra.mxu0 0.0
    %842 = vmatprep.subr.mxu0 0.0
    %843 = vmatpush1.msra.mxu0 0.0
    %844 = vmatprep.subr.mxu0 0.0
    %845 = vmatpush1.msra.mxu0 0.0
    %846 = vmatprep.subr.mxu0 0.0
    %847 = vmatpush1.msra.mxu0 0.0
    %848 = vmatprep.subr.mxu0 0.0
    %849 = vmatpush1.msra.mxu0 0.0
    %850 = vmatprep.subr.mxu0 0.0
    %851 = vmatpush1.msra.mxu0 0.0
    %852 = vmatprep.subr.mxu0 0.0
    %853 = vmatpush1.msra.mxu0 0.0
    %854 = vmatprep.subr.mxu0 0.0
    %855 = vmatpush1.msra.mxu0 0.0
    %856 = vmatprep.subr.mxu0 0.0
    %857 = vmatpush1.msra.mxu0 0.0
    %858 = vmatprep.subr.mxu0 0.0
    %859 = vmatpush1.msra.mxu0 0.0
    %860 = vmatprep.subr.mxu0 0.0
    %861 = vmatpush1.msra.mxu0 0.0
    %862 = vmatprep.subr.mxu0 0.0
    %863 = vmatpush1.msra.mxu0 0.0
    %864 = vmatprep.mubr.f32.mxu0 0.0
    %865 = vmatmul.mubr.f32.gmra.mrb[0].mxu0 %v798
    %v866 = vpop.f32.mrb[0].mxu0
    %v867 = vadd.f32 0.0, %v866
    %v868 = vpop.f32.mrb[0].mxu0
    %869 = vdwg.mxu0
    %v871 = vrot.slane %v867, 2
    %v873 = vadd.f32 %v158, %v871
    %v874 = vxor.u32 %v873, 2147483648
    %v875 = vmul.f32 %v874, 1.442695
    %v876 = vpow.pop %v875
    %v877 = vadd.f32 %v876, 1.0
    %v878 = vrcp.pop %v877
    %v879 = vmul.f32 1.0, %v878
    %v880 = vtanh.pop %v873
    %v882 = vrot.slane %v787, 7
    %v884 = vmul.f32 %v879, %v882
    %886 = vrot.lane.b32.xlu0 %v880, 64
    %v887 = vpop.permute.xlu0 %886
    %v889 = vmul.f32 %v879, %v887
    %891 = vrot.lane.b32.xlu0 %v889, 32
    %v892 = vpop.permute.xlu0 %891
    %v894 = vadd.f32 %v884, %v892
    %v895 = vtanh.pop %v894
    %897 = vrot.lane.b32.xlu0 %v895, 64
    %v898 = vpop.permute.xlu0 %897
    %v900 = vmul.f32 %v879, %v898
    %v902 = vrot.slane %v900, 6
    %903 = vrot.lane.b32.xlu0 %v902, 32
    %v904 = vpop.permute.xlu0 %903
    %v905 = vsel %vm161, %v904, 0
    %907 = vmatprep.subr.mxu0 0.0
    %908 = vmatpush1.msra.mxu0 %v50
    %909 = vmatprep.subr.mxu0 0.0
    %910 = vmatpush1.msra.mxu0 %v51
    %911 = vmatprep.subr.mxu0 0.0
    %912 = vmatpush1.msra.mxu0 %v52
    %913 = vmatprep.subr.mxu0 0.0
    %914 = vmatpush1.msra.mxu0 %v53
    %915 = vmatprep.subr.mxu0 0.0
    %916 = vmatpush1.msra.mxu0 0.0
    %917 = vmatprep.subr.mxu0 0.0
    %918 = vmatpush1.msra.mxu0 0.0
    %919 = vmatprep.subr.mxu0 0.0
    %920 = vmatpush1.msra.mxu0 0.0
    %921 = vmatprep.subr.mxu0 0.0
    %922 = vmatpush1.msra.mxu0 0.0
    %923 = vmatprep.subr.mxu0 0.0
    %924 = vmatpush1.msra.mxu0 0.0
    %925 = vmatprep.subr.mxu0 0.0
    %926 = vmatpush1.msra.mxu0 0.0
    %927 = vmatprep.subr.mxu0 0.0
    %928 = vmatpush1.msra.mxu0 0.0
    %929 = vmatprep.subr.mxu0 0.0
    %930 = vmatpush1.msra.mxu0 0.0
    %931 = vmatprep.subr.mxu0 0.0
    %932 = vmatpush1.msra.mxu0 0.0
    %933 = vmatprep.subr.mxu0 0.0
    %934 = vmatpush1.msra.mxu0 0.0
    %935 = vmatprep.subr.mxu0 0.0
    %936 = vmatpush1.msra.mxu0 0.0
    %937 = vmatprep.subr.mxu0 0.0
    %938 = vmatpush1.msra.mxu0 0.0
    %939 = vmatprep.subr.mxu0 0.0
    %940 = vmatpush1.msra.mxu0 0.0
    %941 = vmatprep.subr.mxu0 0.0
    %942 = vmatpush1.msra.mxu0 0.0
    %943 = vmatprep.subr.mxu0 0.0
    %944 = vmatpush1.msra.mxu0 0.0
    %945 = vmatprep.subr.mxu0 0.0
    %946 = vmatpush1.msra.mxu0 0.0
    %947 = vmatprep.subr.mxu0 0.0
    %948 = vmatpush1.msra.mxu0 0.0
    %949 = vmatprep.subr.mxu0 0.0
    %950 = vmatpush1.msra.mxu0 0.0
    %951 = vmatprep.subr.mxu0 0.0
    %952 = vmatpush1.msra.mxu0 0.0
    %953 = vmatprep.subr.mxu0 0.0
    %954 = vmatpush1.msra.mxu0 0.0
    %955 = vmatprep.subr.mxu0 0.0
    %956 = vmatpush1.msra.mxu0 0.0
    %957 = vmatprep.subr.mxu0 0.0
    %958 = vmatpush1.msra.mxu0 0.0
    %959 = vmatprep.subr.mxu0 0.0
    %960 = vmatpush1.msra.mxu0 0.0
    %961 = vmatprep.subr.mxu0 0.0
    %962 = vmatpush1.msra.mxu0 0.0
    %963 = vmatprep.subr.mxu0 0.0
    %964 = vmatpush1.msra.mxu0 0.0
    %965 = vmatprep.subr.mxu0 0.0
    %966 = vmatpush1.msra.mxu0 0.0
    %967 = vmatprep.subr.mxu0 0.0
    %968 = vmatpush1.msra.mxu0 0.0
    %969 = vmatprep.subr.mxu0 0.0
    %970 = vmatpush1.msra.mxu0 0.0
    %971 = vmatprep.mubr.f32.mxu0 0.0
    %972 = vmatmul.mubr.f32.gmra.mrb[0].mxu0 %v905
    %v973 = vpop.f32.mrb[0].mxu0
    %v974 = vadd.f32 0.0, %v973
    %v975 = vpop.f32.mrb[0].mxu0
    %976 = vdwg.mxu0
    %v978 = vrot.slane %v974, 1
    %v980 = vadd.f32 %v158, %v978
    %v981 = vxor.u32 %v980, 2147483648
    %v982 = vmul.f32 %v981, 1.442695
    %v983 = vpow.pop %v982
    %v984 = vadd.f32 %v983, 1.0
    %v985 = vrcp.pop %v984
    %v986 = vmul.f32 1.0, %v985
    %v987 = vtanh.pop %v980
    %v989 = vrot.slane %v894, 7
    %v991 = vmul.f32 %v986, %v989
    %993 = vrot.lane.b32.xlu0 %v987, 64
    %v994 = vpop.permute.xlu0 %993
    %v996 = vmul.f32 %v986, %v994
    %998 = vrot.lane.b32.xlu0 %v996, 32
    %v999 = vpop.permute.xlu0 %998
    %v1001 = vadd.f32 %v991, %v999
    %v1002 = vtanh.pop %v1001
    %1004 = vrot.lane.b32.xlu0 %v1002, 64
    %v1005 = vpop.permute.xlu0 %1004
    %v1007 = vmul.f32 %v986, %v1005
    %v1008 = vld [vmem:[#allocation5 + $0x38] sm:$0xff]
    %v1009 = vld [vmem:[#allocation5 + $0x40] sm:$0xff]
    %v1010 = vld [vmem:[#allocation5 + $0x48] sm:$0xff]
    %v1011 = vld [vmem:[#allocation5 + $0x50] sm:$0xff]
    %v1012 = vld [vmem:[#allocation5 + $0x58] sm:$0x1]
    %v1013 = vld [vmem:[#allocation5 + $0x60] sm:$0xff]
    %v1014 = vld [vmem:[#allocation5 + $0x68] sm:$0xff]
    %v1015 = vld [vmem:[#allocation5 + $0x70] sm:$0xff]
    %v1016 = vld [vmem:[#allocation5 + $0x78] sm:$0xff]
    %v1017 = vld [vmem:[#allocation5 + $0x80] sm:$0x1]
    %v1019 = vrot.slane %v1007, 7
    %1020 = vrot.lane.b32.xlu0 %v1019, 32
    %v1021 = vpop.permute.xlu0 %1020
    %v1022 = vsel %vm161, %v1021, 0
    %1024 = vmatprep.subr.mxu0 0.0
    %1025 = vmatpush1.msra.mxu0 %v1008
    %1026 = vmatprep.subr.mxu0 0.0
    %1027 = vmatpush1.msra.mxu0 %v1009
    %1028 = vmatprep.subr.mxu0 0.0
    %1029 = vmatpush1.msra.mxu0 %v1010
    %1030 = vmatprep.subr.mxu0 0.0
    %1031 = vmatpush1.msra.mxu0 %v1011
    %1032 = vmatprep.subr.mxu0 0.0
    %1033 = vmatpush1.msra.mxu0 0.0
    %1034 = vmatprep.subr.mxu0 0.0
    %1035 = vmatpush1.msra.mxu0 0.0
    %1036 = vmatprep.subr.mxu0 0.0
    %1037 = vmatpush1.msra.mxu0 0.0
    %1038 = vmatprep.subr.mxu0 0.0
    %1039 = vmatpush1.msra.mxu0 0.0
    %1040 = vmatprep.subr.mxu0 0.0
    %1041 = vmatpush1.msra.mxu0 0.0
    %1042 = vmatprep.subr.mxu0 0.0
    %1043 = vmatpush1.msra.mxu0 0.0
    %1044 = vmatprep.subr.mxu0 0.0
    %1045 = vmatpush1.msra.mxu0 0.0
    %1046 = vmatprep.subr.mxu0 0.0
    %1047 = vmatpush1.msra.mxu0 0.0
    %1048 = vmatprep.subr.mxu0 0.0
    %1049 = vmatpush1.msra.mxu0 0.0
    %1050 = vmatprep.subr.mxu0 0.0
    %1051 = vmatpush1.msra.mxu0 0.0
    %1052 = vmatprep.subr.mxu0 0.0
    %1053 = vmatpush1.msra.mxu0 0.0
    %1054 = vmatprep.subr.mxu0 0.0
    %1055 = vmatpush1.msra.mxu0 0.0
    %1056 = vmatprep.subr.mxu0 0.0
    %1057 = vmatpush1.msra.mxu0 0.0
    %1058 = vmatprep.subr.mxu0 0.0
    %1059 = vmatpush1.msra.mxu0 0.0
    %1060 = vmatprep.subr.mxu0 0.0
    %1061 = vmatpush1.msra.mxu0 0.0
    %1062 = vmatprep.subr.mxu0 0.0
    %1063 = vmatpush1.msra.mxu0 0.0
    %1064 = vmatprep.subr.mxu0 0.0
    %1065 = vmatpush1.msra.mxu0 0.0
    %1066 = vmatprep.subr.mxu0 0.0
    %1067 = vmatpush1.msra.mxu0 0.0
    %1068 = vmatprep.subr.mxu0 0.0
    %1069 = vmatpush1.msra.mxu0 0.0
    %1070 = vmatprep.subr.mxu0 0.0
    %1071 = vmatpush1.msra.mxu0 0.0
    %1072 = vmatprep.subr.mxu0 0.0
    %1073 = vmatpush1.msra.mxu0 0.0
    %1074 = vmatprep.subr.mxu0 0.0
    %1075 = vmatpush1.msra.mxu0 0.0
    %1076 = vmatprep.subr.mxu0 0.0
    %1077 = vmatpush1.msra.mxu0 0.0
    %1078 = vmatprep.subr.mxu0 0.0
    %1079 = vmatpush1.msra.mxu0 0.0
    %1080 = vmatprep.subr.mxu0 0.0
    %1081 = vmatpush1.msra.mxu0 0.0
    %1082 = vmatprep.subr.mxu0 0.0
    %1083 = vmatpush1.msra.mxu0 0.0
    %1084 = vmatprep.subr.mxu0 0.0
    %1085 = vmatpush1.msra.mxu0 0.0
    %1086 = vmatprep.subr.mxu0 0.0
    %1087 = vmatpush1.msra.mxu0 0.0
    %1088 = vmatprep.mubr.f32.mxu0 0.0
    %1089 = vmatmul.mubr.f32.gmra.mrb[0].mxu0 %v1022
    %v1090 = vpop.f32.mrb[0].mxu0
    %v1091 = vadd.f32 %v1012, %v1090
    %v1092 = vpop.f32.mrb[0].mxu0
    %1093 = vdwg.mxu0
    %v1094 = vmax.f32 %v1091, 0.0
    %v1096 = vsel %vm161, %v1094, 0
    %1098 = vmatprep.subr.mxu0 0.0
    %1099 = vmatpush1.msra.mxu0 %v1013
    %1100 = vmatprep.subr.mxu0 0.0
    %1101 = vmatpush1.msra.mxu0 %v1014
    %1102 = vmatprep.subr.mxu0 0.0
    %1103 = vmatpush1.msra.mxu0 %v1015
    %1104 = vmatprep.subr.mxu0 0.0
    %1105 = vmatpush1.msra.mxu0 %v1016
    %1106 = vmatprep.subr.mxu0 0.0
    %1107 = vmatpush1.msra.mxu0 0.0
    %1108 = vmatprep.subr.mxu0 0.0
    %1109 = vmatpush1.msra.mxu0 0.0
    %1110 = vmatprep.subr.mxu0 0.0
    %1111 = vmatpush1.msra.mxu0 0.0
    %1112 = vmatprep.subr.mxu0 0.0
    %1113 = vmatpush1.msra.mxu0 0.0
    %1114 = vmatprep.subr.mxu0 0.0
    %1115 = vmatpush1.msra.mxu0 0.0
    %1116 = vmatprep.subr.mxu0 0.0
    %1117 = vmatpush1.msra.mxu0 0.0
    %1118 = vmatprep.subr.mxu0 0.0
    %1119 = vmatpush1.msra.mxu0 0.0
    %1120 = vmatprep.subr.mxu0 0.0
    %1121 = vmatpush1.msra.mxu0 0.0
    %1122 = vmatprep.subr.mxu0 0.0
    %1123 = vmatpush1.msra.mxu0 0.0
    %1124 = vmatprep.subr.mxu0 0.0
    %1125 = vmatpush1.msra.mxu0 0.0
    %1126 = vmatprep.subr.mxu0 0.0
    %1127 = vmatpush1.msra.mxu0 0.0
    %1128 = vmatprep.subr.mxu0 0.0
    %1129 = vmatpush1.msra.mxu0 0.0
    %1130 = vmatprep.subr.mxu0 0.0
    %1131 = vmatpush1.msra.mxu0 0.0
    %1132 = vmatprep.subr.mxu0 0.0
    %1133 = vmatpush1.msra.mxu0 0.0
    %1134 = vmatprep.subr.mxu0 0.0
    %1135 = vmatpush1.msra.mxu0 0.0
    %1136 = vmatprep.subr.mxu0 0.0
    %1137 = vmatpush1.msra.mxu0 0.0
    %1138 = vmatprep.subr.mxu0 0.0
    %1139 = vmatpush1.msra.mxu0 0.0
    %1140 = vmatprep.subr.mxu0 0.0
    %1141 = vmatpush1.msra.mxu0 0.0
    %1142 = vmatprep.subr.mxu0 0.0
    %1143 = vmatpush1.msra.mxu0 0.0
    %1144 = vmatprep.subr.mxu0 0.0
    %1145 = vmatpush1.msra.mxu0 0.0
    %1146 = vmatprep.subr.mxu0 0.0
    %1147 = vmatpush1.msra.mxu0 0.0
    %1148 = vmatprep.subr.mxu0 0.0
    %1149 = vmatpush1.msra.mxu0 0.0
    %1150 = vmatprep.subr.mxu0 0.0
    %1151 = vmatpush1.msra.mxu0 0.0
    %1152 = vmatprep.subr.mxu0 0.0
    %1153 = vmatpush1.msra.mxu0 0.0
    %1154 = vmatprep.subr.mxu0 0.0
    %1155 = vmatpush1.msra.mxu0 0.0
    %1156 = vmatprep.subr.mxu0 0.0
    %1157 = vmatpush1.msra.mxu0 0.0
    %1158 = vmatprep.subr.mxu0 0.0
    %1159 = vmatpush1.msra.mxu0 0.0
    %1160 = vmatprep.subr.mxu0 0.0
    %1161 = vmatpush1.msra.mxu0 0.0
    %1162 = vmatprep.mubr.f32.mxu0 0.0
    %1163 = vmatmul.mubr.f32.gmra.mrb[0].mxu0 %v1096
    %v1164 = vpop.f32.mrb[0].mxu0
    %v1165 = vadd.f32 %v1017, %v1164
    %v1166 = vpop.f32.mrb[0].mxu0
    %1167 = vdwg.mxu0
    %vm1168 = vcmask 32768
    %v1169 = vsel %vm1168, %v1165, -inf
    %1170 = vmax.xlane.f32.xlu0 %v1169
    %v1171 = vpop.xlane.xlu0 %1170
    %v1172 = vsub.f32 %v1165, %v1171
    %v1173 = vmul.f32 %v1172, 1.442695
    %v1174 = vpow.pop %v1173
    %v1175 = vsel %vm1168, %v1174, 0.0
    %1176 = vadd.xlane.f32.xlu0 %v1175
    %v1177 = vpop.xlane.xlu0 %1176
    %v1178 = vlog2.pop %v1177
    %v1179 = vmul.f32 %v1178, 0.6931472
    %v1180 = vsub.f32 %v1172, %v1179
    %1181 = vst.msk [vmem:[#allocation7] sm:$0x1] %vm1168, %v1180
    // Predicated region
    $region18: #{rnn_forward.1} parent=1 // pred_check
      _
    $region19: #{rnn_forward.1} parent=1 // pred_check_branch
      %1183 = sbr.rel (0) target = $region21
    $region20: #{rnn_forward.1} parent=1 // pred_region
      %s1185 = ssub.s32 16, 16
      %1186 = vsyncadd [#allocation4], %s1185
      %s1188 = sshll.u32 [#allocation7], 4
      %s1189 = int_to_ptr.vmem [resolvable:$true] %s1188
      %1191 = dma.vmem_to_hbm [thread:$0]  %s1189, 16, %s2, [#allocation4]
    $region21: #{rnn_forward.1} parent=1 // pred_fallthru
      _
    // Predicated region
    $region22: #{rnn_forward.1} parent=1 // pred_check
      _
    $region23: #{rnn_forward.1} parent=1 // pred_check_branch
      %1193 = sbr.rel (0) target = $region25
    $region24: #{rnn_forward.1} parent=1 // pred_region
      %1194 = dma.done [#allocation4], 16
    $region25: #{rnn_forward.1} parent=1 // pred_fallthru
      _
    %1195 = vsyncpa [#allocation3], 1
    %1196 = vsyncpa [#allocation6], 1
    %1197 = vsyncpa [#allocation4], 1

</llo_original>
